<compile_context>
chip_gen: v5e
topology: v5e:2x2
jax: 0.10.0
libtpu: 0.0.40
codegen_flags: <defaults>
</compile_context>

<pallas_src>
import jax
import jax.numpy as jnp
from jax import lax
from jax.experimental import pallas as pl
from jax.experimental.pallas import tpu as pltpu

_EPS2 = jnp.float32(1e-24)  # F.normalize eps=1e-12, squared


def _round_up(v, m):
    return ((v + m - 1) // m) * m


def _largest_divisor_tile(total, candidates):
    for c in candidates:
        if c <= total and total % c == 0:
            return c
    return total


def _plan_cn(C, N):
    """Padded sizes / tile sizes along the contraction (C) and class (N) axes."""
    Cp = _round_up(C, 128)
    if Cp <= 2048:
        TK = Cp                      # whole contraction in one K block (common case)
    else:
        TK = _largest_divisor_tile(Cp, (2048, 1024, 512, 256, 128))
    Np = _round_up(N, 128)           # lane-dense output, padded only to 128
    TN = _largest_divisor_tile(Np, (512, 256, 128))
    return TK, Cp, TN, Np


def prepare_head_weight(head_weight):
    """One-time (init-time) weight preparation: column-normalize in f32, zero-pad to
    the (Cp, Np) kernel layout, cast to bf16.  Cached and reused every forward call."""
    C, N = head_weight.shape
    _, Cp, _, Np = _plan_cn(C, N)
    w = head_weight.astype(jnp.float32)
    inv_col = lax.rsqrt(jnp.maximum(jnp.sum(w * w, axis=0, keepdims=True), _EPS2))
    wn = w * inv_col
    wn_p = jnp.pad(wn, ((0, Cp - C), (0, Np - N))).astype(jnp.bfloat16)
    return wn_p


def _normed_linear_kernel(x_ref, w_ref, inv_x_ref, o_ref, acc_ref):
    """acc += x @ w (bf16 -> f32 MXU); on last K step scale by per-row inverse norm."""
    k = pl.program_id(2)

    @pl.when(k == 0)
    def _():
        acc_ref[...] = jnp.zeros_like(acc_ref)

    acc_ref[...] += jnp.dot(x_ref[...], w_ref[...],
                            preferred_element_type=jnp.float32)

    @pl.when(k == pl.num_programs(2) - 1)
    def _():
        o_ref[...] = (acc_ref[...] * inv_x_ref[...]).astype(o_ref.dtype)


def prompt_learner_forward(x, w_prepared, num_classes):
    """Pallas implementation of PromptLearner.forward (== NormedLinear).

    `w_prepared` is the init-time normalized / padded / bf16 weight from
    prepare_head_weight; `x` is (B, prompt_channels) in f32.
    """
    B, C = x.shape
    TK, Cp, TN, Np = _plan_cn(C, num_classes)
    assert w_prepared.shape == (Cp, Np), "weight was prepared for different dims"

    # Batch tile: multiple of 16 (bf16 sublane packing), capped at 256 (MXU rows).
    TB = 256 if B > 256 else _round_up(B, 16)
    Bp = _round_up(B, TB)

    # Pad x once in f32, compute inv row norms from the f32 values, then cast to bf16.
    # Zero-padded rows give acc == 0, and 0 * rsqrt(eps^2) == 0 -> no NaNs, sliced off.
    xf = jnp.pad(x.astype(jnp.float32), ((0, Bp - B), (0, Cp - C)))
    inv_x = lax.rsqrt(jnp.maximum(jnp.sum(xf * xf, axis=1, keepdims=True), _EPS2))
    x_bf = xf.astype(jnp.bfloat16)

    nj, ni, nk = Np // TN, Bp // TB, Cp // TK

    # Double-buffered inputs/outputs + f32 accumulator, with headroom; explicit limit
    # so v5e's 16 MiB scoped default never bites, clamped for v7x's 64 MiB VMEM.
    vmem_bytes = (2 * (TB * TK * 2 + TK * TN * 2 + TB * TN * 4 + TB * 4)
                  + TB * TN * 4 + (4 << 20))
    vmem_bytes = int(min(max(vmem_bytes, 16 << 20), 48 << 20))

    out = pl.pallas_call(
        _normed_linear_kernel,
        out_shape=jax.ShapeDtypeStruct((Bp, Np), jnp.float32),
        grid_spec=pltpu.PrefetchScalarGridSpec(
            num_scalar_prefetch=0,
            # N-tiles on the SLOW axis, batch tiles inner, reduction last ("arbitrary"):
            # with nk == 1 the weight block index only changes on the slow axis, so W is
            # read from HBM exactly once instead of once per batch tile.
            grid=(nj, ni, nk),
            in_specs=[
                pl.BlockSpec((TB, TK), lambda j, i, k: (i, k)),   # x
                pl.BlockSpec((TK, TN), lambda j, i, k: (k, j)),   # normalized W (bf16)
                pl.BlockSpec((TB, 1), lambda j, i, k: (i, 0)),    # inv row norms of x
            ],
            out_specs=pl.BlockSpec((TB, TN), lambda j, i, k: (i, j)),
            scratch_shapes=[pltpu.VMEM((TB, TN), jnp.float32)],
        ),
        compiler_params=pltpu.CompilerParams(
            dimension_semantics=("parallel", "parallel", "arbitrary"),
            vmem_limit_bytes=vmem_bytes,
        ),
    )(x_bf, w_prepared, inv_x)

    return out[:B, :num_classes]


def init_prompt_learner_params(
    key,
    num_classes,
    prompt_length,
    prompt_depth,
    prompt_channels,
    pool_size=20,
    pool_blocks=6,
):
    """Deterministic, in-script parameter construction mirroring __init__."""
    k_tok, k_pool, k_keys, k_head = jax.random.split(key, 4)

    # trunc_normal_(std=0.02) approximated by truncated normal draw * 0.02
    prompt_tokens = (
        jax.random.truncated_normal(
            k_tok, -2.0, 2.0, (prompt_depth, prompt_length, prompt_channels)
        )
        * 0.02
    )
    prompt_tokens_pool = (
        jax.random.truncated_normal(
            k_pool, -2.0, 2.0,
            (pool_size, pool_blocks, prompt_length, prompt_channels),
        )
        * 0.02
    )
    prompt_keys = (
        jax.random.truncated_normal(k_keys, -2.0, 2.0, (pool_size, prompt_channels))
        * 0.02
    )

    # NormedLinear weight: uniform(-1,1), renorm each column to L2 norm <= 1e-5,
    # then multiply by 1e5 -> each column has L2 norm (at most) 1.
    w = jax.random.uniform(
        k_head, (prompt_channels, num_classes), minval=-1.0, maxval=1.0
    )
    col_norm = jnp.sqrt(jnp.sum(w * w, axis=0, keepdims=True))
    scale = jnp.minimum(1.0, 1e-5 / jnp.maximum(col_norm, 1e-12))  # renorm_(2,1,1e-5)
    head_weight = w * scale * 1e5

    return {
        "Prompt_Tokens": prompt_tokens,
        "Prompt_Tokens_pool": prompt_tokens_pool,
        "Prompt_Keys": prompt_keys,
        "head_weight": head_weight,
    }


if __name__ == "__main__":
    # Small shapes consistent with forward: x is (batch, prompt_channels)
    num_classes = 16
    prompt_length = 8
    prompt_depth = 4
    prompt_channels = 32
    batch = 8

    key = jax.random.PRNGKey(0)
    k_params, k_x = jax.random.split(key)

    params = init_prompt_learner_params(
        k_params,
        num_classes=num_classes,
        prompt_length=prompt_length,
        prompt_depth=prompt_depth,
        prompt_channels=prompt_channels,
    )
    # Init-time, once: normalized / padded / bf16 weight (hoisted out of the kernel).
    w_prepared = prepare_head_weight(params["head_weight"])

    x = jax.random.normal(k_x, (batch, prompt_channels), dtype=jnp.float32)

    out = prompt_learner_forward(x, w_prepared, num_classes)
    out = jax.block_until_ready(out)

    # Sanity check against plain-JAX f32 reference of the original math.
    xn = x / jnp.maximum(jnp.linalg.norm(x, axis=1, keepdims=True), 1e-12)
    wn = params["head_weight"] / jnp.maximum(
        jnp.linalg.norm(params["head_weight"], axis=0, keepdims=True), 1e-12
    )
    ref = xn @ wn
    assert out.shape == (batch, num_classes)
    # bf16 MXU operands -> looser tolerance than an all-f32 path.
    assert jnp.allclose(out, ref, atol=5e-2, rtol=5e-2), "mismatch vs reference"

    print("KERNEL_OK")
</pallas_src>

<mosaic_0001>
module attributes {stable_mosaic.version = 11 : i64} {
  func.func @_normed_linear_kernel(%arg0: i32, %arg1: i32, %arg2: i32, %arg3: memref<16x128xbf16, #tpu.memory_space<vmem>>, %arg4: memref<128x128xbf16, #tpu.memory_space<vmem>>, %arg5: memref<16x1xf32, #tpu.memory_space<vmem>>, %arg6: memref<16x128xf32, #tpu.memory_space<vmem>>, %arg7: memref<16x128xf32, #tpu.memory_space<vmem>>) attributes {dimension_semantics = [#tpu.dimension_semantics<parallel>, #tpu.dimension_semantics<parallel>, #tpu.dimension_semantics<arbitrary>], iteration_bounds = array<i64: 1, 1, 1>, scalar_prefetch = 0 : i64, scratch_operands = 1 : i64, tpu.core_type = #tpu.core_type<tc>, window_params = [{transform_indices = @transform_0, window_bounds = array<i64: 16, 128>}, {transform_indices = @transform_1, window_bounds = array<i64: 128, 128>}, {transform_indices = @transform_2, window_bounds = array<i64: 16, 1>}, {transform_indices = @transform_3, window_bounds = array<i64: 16, 128>}]} {
    %c0_i32 = arith.constant 0 : i32
    %0 = arith.cmpi eq, %arg2, %c0_i32 : i32
    %1 = arith.extui %0 : i1 to i32
    %c0_i32_0 = arith.constant 0 : i32
    %2 = arith.cmpi ne, %1, %c0_i32_0 : i32
    scf.if %2 {
      %cst_10 = arith.constant 0.000000e+00 : f32
      %12 = vector.broadcast %cst_10 : f32 to vector<16x128xf32>
      %c0_11 = arith.constant 0 : index
      %c0_12 = arith.constant 0 : index
      %13 = vector.load %arg7[%c0_11, %c0_12] : memref<16x128xf32, #tpu.memory_space<vmem>>, vector<16x128xf32>
      tpu.vector_store %arg7[%c0_11, %c0_12], %12 {strides = array<i32>} : memref<16x128xf32, #tpu.memory_space<vmem>>, vector<16x128xf32>,
    } else {
    }
    %c0 = arith.constant 0 : index
    %c0_1 = arith.constant 0 : index
    %3 = vector.load %arg7[%c0, %c0_1] : memref<16x128xf32, #tpu.memory_space<vmem>>, vector<16x128xf32>
    %c0_2 = arith.constant 0 : index
    %c0_3 = arith.constant 0 : index
    %4 = vector.load %arg3[%c0_2, %c0_3] : memref<16x128xbf16, #tpu.memory_space<vmem>>, vector<16x128xbf16>
    %c0_4 = arith.constant 0 : index
    %c0_5 = arith.constant 0 : index
    %5 = vector.load %arg4[%c0_4, %c0_5] : memref<128x128xbf16, #tpu.memory_space<vmem>>, vector<128x128xbf16>
    %cst = arith.constant dense<0.000000e+00> : vector<16x128xf32>
    %6 = tpu.matmul %4, %5, %cst {dimension_numbers = #tpu.dot_dimension_numbers<[1], [0], [0], [1], [0, 0, 1, 1], [], []>} : vector<16x128xbf16>, vector<128x128xbf16>, vector<16x128xf32> -> vector<16x128xf32>
    %7 = arith.addf %3, %6 : vector<16x128xf32>
    %c0_6 = arith.constant 0 : index
    %c0_7 = arith.constant 0 : index
    %8 = vector.load %arg7[%c0_6, %c0_7] : memref<16x128xf32, #tpu.memory_space<vmem>>, vector<16x128xf32>
    tpu.vector_store %arg7[%c0_6, %c0_7], %7 {strides = array<i32>} : memref<16x128xf32, #tpu.memory_space<vmem>>, vector<16x128xf32>,
    %c0_i32_8 = arith.constant 0 : i32
    %9 = arith.cmpi eq, %arg2, %c0_i32_8 : i32
    %10 = arith.extui %9 : i1 to i32
    %c0_i32_9 = arith.constant 0 : i32
    %11 = arith.cmpi ne, %10, %c0_i32_9 : i32
    scf.if %11 {
      %c0_10 = arith.constant 0 : index
      %c0_11 = arith.constant 0 : index
      %12 = vector.load %arg7[%c0_10, %c0_11] : memref<16x128xf32, #tpu.memory_space<vmem>>, vector<16x128xf32>
      %c0_12 = arith.constant 0 : index
      %c0_13 = arith.constant 0 : index
      %13 = vector.load %arg5[%c0_12, %c0_13] : memref<16x1xf32, #tpu.memory_space<vmem>>, vector<16x1xf32>
      %14 = vector.broadcast %13 : vector<16x1xf32> to vector<16x128xf32>
      %15 = arith.mulf %12, %14 : vector<16x128xf32>
      %c0_14 = arith.constant 0 : index
      %c0_15 = arith.constant 0 : index
      %16 = vector.load %arg6[%c0_14, %c0_15] : memref<16x128xf32, #tpu.memory_space<vmem>>, vector<16x128xf32>
      tpu.vector_store %arg6[%c0_14, %c0_15], %15 {strides = array<i32>} : memref<16x128xf32, #tpu.memory_space<vmem>>, vector<16x128xf32>,
    } else {
    }
    return
  }
  func.func @transform_0(%arg0: i32, %arg1: i32, %arg2: i32) -> (i32, i32) {
    %c0_i32 = arith.constant 0 : i32
    return %arg1, %arg2 : i32, i32
  }
  func.func @transform_1(%arg0: i32, %arg1: i32, %arg2: i32) -> (i32, i32) {
    %c0_i32 = arith.constant 0 : i32
    return %arg2, %arg0 : i32, i32
  }
  func.func @transform_2(%arg0: i32, %arg1: i32, %arg2: i32) -> (i32, i32) {
    %c0_i32 = arith.constant 0 : i32
    %c0_i32_0 = arith.constant 0 : i32
    return %arg1, %c0_i32 : i32, i32
  }
  func.func @transform_3(%arg0: i32, %arg1: i32, %arg2: i32) -> (i32, i32) {
    %c0_i32 = arith.constant 0 : i32
    return %arg1, %arg0 : i32, i32
  }
}

</mosaic_0001>

<llo_original>
// kernel: tpu_custom_call.1
$region0: #{tpu_custom_call.1}
  #allocation0 [shape = 'u32[]', space=smem, size = 0x4, offset = 0x4, fixed_abs, tag = 'smem constant byte address 0x4 - core index']
  #allocation1 [shape = 'u32[72,128]{1,0:T(1,128)}', space=vmem, size = 0x9000, scoped, tag = 'internal scratch']
  #allocation2 [shape = 'f32[16,128]{1,0:T(8,128)}', space=vmem, size = 0x2000, scoped, tag = 'scratch operand']
  %s0 = inlined_call_operand.vmem [shape: bf16[16,128], index: 0, kind: input, shape index: {}]
  %s1 = inlined_call_operand.hbm [shape: bf16[128,128], index: 1, kind: input, shape index: {}]
  %s2 = inlined_call_operand.vmem [shape: f32[16,1], index: 2, kind: input, shape index: {}]
  %s3 = inlined_call_operand.hbm [shape: f32[16,128], index: 3, kind: output, shape index: {}]
  %s4 = sld [smem:[#allocation0]]
  $region34: #{tpu_custom_call.1} parent=0
    _
  %s6 = ssub.s32 1, %s4
  %s7 = scalar_select 0, %s6, %s4
  $region1: #{tpu_custom_call.1} parent=0
    #allocation3 [shape = 'u8[32768]{0}', space=vmem, size = 0x8000, scoped, tag = 'input window, operand 1, single buffered']
    #allocation4 [shape = 's32[1]{0}', space=sflag, size = 0x4, scoped, tag = 'scoped memory for tpu_custom_call.1']
    #allocation5 [shape = 's32[1]{0}', space=sflag, size = 0x4, scoped, tag = 'scoped memory for tpu_custom_call.1']
    #allocation6 [shape = 'u8[8192]{0}', space=vmem, size = 0x2000, scoped, tag = 'output window, operand 0, single buffered']
    %8 = vsyncpa [#allocation4], 0
    %9 = vsyncpa [#allocation5], 0
    // Predicated region
    $region2: #{tpu_custom_call.1} parent=1 // pred_check
      _
    $region3: #{tpu_custom_call.1} parent=1 // pred_check_branch
      %11 = sbr.rel (0) target = $region5
    $region4: #{tpu_custom_call.1} parent=1 // pred_region
      _
    $region5: #{tpu_custom_call.1} parent=1 // pred_fallthru
      _
    // Predicated region
    $region6: #{tpu_custom_call.1} parent=1 // pred_check
      _
    $region7: #{tpu_custom_call.1} parent=1 // pred_check_branch
      %13 = sbr.rel (0) target = $region9
    $region8: #{tpu_custom_call.1} parent=1 // pred_region
      %15 = vsyncadd [#allocation4], 0
      %s16 = sshll.u32 %s1, 4
      %s17 = int_to_ptr.hbm [resolvable:$true] %s16
      %s18 = sshll.u32 [#allocation3], 4
      %s19 = int_to_ptr.vmem [resolvable:$true] %s18
      %24 = dma.hbm_to_vmem [thread:$0]  %s17, 1024, %s19, [#allocation4], 64, 64, 4
    $region9: #{tpu_custom_call.1} parent=1 // pred_fallthru
      _
    // Predicated region
    $region10: #{tpu_custom_call.1} parent=1 // pred_check
      _
    $region11: #{tpu_custom_call.1} parent=1 // pred_check_branch
      %26 = sbr.rel (0) target = $region13
    $region12: #{tpu_custom_call.1} parent=1 // pred_region
      _
    $region13: #{tpu_custom_call.1} parent=1 // pred_fallthru
      _
    // Predicated region
    $region14: #{tpu_custom_call.1} parent=1 // pred_check
      _
    $region15: #{tpu_custom_call.1} parent=1 // pred_check_branch
      %28 = sbr.rel (0) target = $region17
    $region16: #{tpu_custom_call.1} parent=1 // pred_region
      %30 = dma.done [#allocation4], 1024
    $region17: #{tpu_custom_call.1} parent=1 // pred_fallthru
      _
    %p31 = scmp.eq.s32.totalorder 0, 0
    // Predicated region
    $region18: #{tpu_custom_call.1} parent=1 // pred_check
      %p32 = pneg %p31
    $region19: #{tpu_custom_call.1} parent=1 // pred_check_branch
      %34 = sbr.rel (%p32) target = $region21
    $region20: #{tpu_custom_call.1} parent=1 // pred_region
      %35 = vst [vmem:[#allocation2] sm:$0xff] 0.0
      %36 = vst [vmem:[#allocation2 + $0x8] sm:$0xff] 0.0
    $region21: #{tpu_custom_call.1} parent=1 // pred_fallthru
      _
    %v37 = vld [vmem:[#allocation2] sm:$0xff]
    %v38 = vld [vmem:[#allocation2 + $0x8] sm:$0xff]
    %v39 = vld [vmem:[%s0] sm:$0xf]
    %v40 = vld [vmem:[%s0 + $0x4] sm:$0xf]
    %v41 = vld [vmem:[#allocation3] sm:$0xf]
    %v42 = vld [vmem:[#allocation3 + $0x4] sm:$0xf]
    %v43 = vld [vmem:[#allocation3 + $0x8] sm:$0xf]
    %v44 = vld [vmem:[#allocation3 + $0xc] sm:$0xf]
    %v45 = vld [vmem:[#allocation3 + $0x10] sm:$0xf]
    %v46 = vld [vmem:[#allocation3 + $0x14] sm:$0xf]
    %v47 = vld [vmem:[#allocation3 + $0x18] sm:$0xf]
    %v48 = vld [vmem:[#allocation3 + $0x1c] sm:$0xf]
    %v49 = vld [vmem:[#allocation3 + $0x20] sm:$0xf]
    %v50 = vld [vmem:[#allocation3 + $0x24] sm:$0xf]
    %v51 = vld [vmem:[#allocation3 + $0x28] sm:$0xf]
    %v52 = vld [vmem:[#allocation3 + $0x2c] sm:$0xf]
    %v53 = vld [vmem:[#allocation3 + $0x30] sm:$0xf]
    %v54 = vld [vmem:[#allocation3 + $0x34] sm:$0xf]
    %v55 = vld [vmem:[#allocation3 + $0x38] sm:$0xf]
    %v56 = vld [vmem:[#allocation3 + $0x3c] sm:$0xf]
    %v59 = vunpack.c.l.b16 %v39
    %v60 = vunpack.c.l.b16 %v40
    %v61 = vpack.c.b16 %v60, %v59
    %v79 = vunpack.c.l.b16 %v41
    %v80 = vunpack.c.l.b16 %v42
    %v81 = vunpack.c.l.b16 %v43
    %v82 = vunpack.c.l.b16 %v44
    %v83 = vunpack.c.l.b16 %v45
    %v84 = vunpack.c.l.b16 %v46
    %v85 = vunpack.c.l.b16 %v47
    %v86 = vunpack.c.l.b16 %v48
    %v87 = vunpack.c.l.b16 %v49
    %v88 = vunpack.c.l.b16 %v50
    %v89 = vunpack.c.l.b16 %v51
    %v90 = vunpack.c.l.b16 %v52
    %v91 = vunpack.c.l.b16 %v53
    %v92 = vunpack.c.l.b16 %v54
    %v93 = vunpack.c.l.b16 %v55
    %v94 = vunpack.c.l.b16 %v56
    %v95 = vpack.c.b16 %v80, %v79
    %v96 = vpack.c.b16 %v82, %v81
    %v97 = vpack.c.b16 %v84, %v83
    %v98 = vpack.c.b16 %v86, %v85
    %v99 = vpack.c.b16 %v88, %v87
    %v100 = vpack.c.b16 %v90, %v89
    %v101 = vpack.c.b16 %v92, %v91
    %v102 = vpack.c.b16 %v94, %v93
    %111 = vmatpush.bf16.msra.mxu0 %v102
    %112 = vmatpush.bf16.msra.mxu0 %v101
    %113 = vmatpush.bf16.msra.mxu0 %v100
    %114 = vmatpush.bf16.msra.mxu0 %v99
    %115 = vmatpush.bf16.msra.mxu0 %v98
    %116 = vmatpush.bf16.msra.mxu0 %v97
    %117 = vmatpush.bf16.msra.mxu0 %v96
    %118 = vmatpush.bf16.msra.mxu0 %v95
    %119 = vmatmul.bf16.gmra.mxu0 %v61
    %v120 = vpop.f32.mrf.mxu0
    %v121 = vadd.f32 0.0, %v120
    %v122 = vpop.f32.mrf.mxu0
    %v123 = vadd.f32 0.0, %v122
    %124 = vdwg.mxu0
    %v125 = vadd.f32 %v37, %v121
    %v126 = vadd.f32 %v38, %v123
    %127 = vst [vmem:[#allocation2] sm:$0xff] %v125
    %128 = vst [vmem:[#allocation2 + $0x8] sm:$0xff] %v126
    // Predicated region
    $region22: #{tpu_custom_call.1} parent=1 // pred_check
      %p129 = pneg %p31
    $region23: #{tpu_custom_call.1} parent=1 // pred_check_branch
      %131 = sbr.rel (%p129) target = $region25
    $region24: #{tpu_custom_call.1} parent=1 // pred_region
      %v132 = vld [vmem:[#allocation2] sm:$0xff]
      %v133 = vld [vmem:[#allocation2 + $0x8] sm:$0xff]
      %v134 = vld [vmem:[%s2] sm:$0xff]
      %v135 = vld [vmem:[%s2 + $0x8] sm:$0xff]
      %137 = vset.pattern.permute.xlu0 0
      %138 = vperm.xlu0 %137, %v134
      %v139 = vpop.permute.xlu0 %138
      %142 = vset.pattern.permute.xlu0 0
      %143 = vperm.xlu0 %142, %v135
      %v144 = vpop.permute.xlu0 %143
      %v146 = vmul.f32 %v132, %v139
      %v147 = vmul.f32 %v133, %v144
      %148 = vst [vmem:[#allocation6] sm:$0xff] %v146
      %149 = vst [vmem:[#allocation6 + $0x8] sm:$0xff] %v147
    $region25: #{tpu_custom_call.1} parent=1 // pred_fallthru
      _
    // Predicated region
    $region26: #{tpu_custom_call.1} parent=1 // pred_check
      _
    $region27: #{tpu_custom_call.1} parent=1 // pred_check_branch
      %151 = sbr.rel (0) target = $region29
    $region28: #{tpu_custom_call.1} parent=1 // pred_region
      %153 = vsyncadd [#allocation5], 0
      %s154 = sshll.u32 [#allocation6], 4
      %s155 = int_to_ptr.vmem [resolvable:$true] %s154
      %s156 = sshll.u32 %s3, 4
      %s157 = int_to_ptr.hbm [resolvable:$true] %s156
      %162 = dma.vmem_to_hbm [thread:$0]  %s155, 256, %s157, [#allocation5], 128, 128, 8
    $region29: #{tpu_custom_call.1} parent=1 // pred_fallthru
      _
    // Predicated region
    $region30: #{tpu_custom_call.1} parent=1 // pred_check
      _
    $region31: #{tpu_custom_call.1} parent=1 // pred_check_branch
      %164 = sbr.rel (0) target = $region33
    $region32: #{tpu_custom_call.1} parent=1 // pred_region
      %166 = dma.done [#allocation5], 256
    $region33: #{tpu_custom_call.1} parent=1 // pred_fallthru
      _
    %167 = vsyncpa [#allocation4], 1
    %168 = vsyncpa [#allocation5], 1

</llo_original>
